<compile_context>
chip_gen: v6e
topology: v6e:2x2x1
jax: 0.10.0
libtpu: 0.0.40
codegen_flags: <defaults>
</compile_context>

<pallas_src>
import jax
import jax.numpy as jnp
from jax.experimental import pallas as pl
from jax.experimental.pallas import tpu as pltpu


def _make_ce_kernel(n_total: int, needs_mask: bool):
    """Build a CE kernel closed over the true (unpadded) batch size."""
    inv_n = 1.0 / float(n_total)

    def _ce_kernel(logits_ref, targets_ref, loss_ref, acc_ref):
        i = pl.program_id(0)

        @pl.when(i == 0)
        def _():
            acc_ref[0] = jnp.float32(0.0)

        logits = logits_ref[...].astype(jnp.float32)             # (T, C) f32 (in-kernel cast)
        tgt = targets_ref[...]                                    # (T, 1) int32
        t, c = logits.shape

        if needs_mask:
            # Mask rows past the true batch size (remainder-tile padding). Zeroing
            # first also neutralizes any garbage/NaN bits in the padded region.
            row_ids = i * t + jax.lax.broadcasted_iota(jnp.int32, (t, 1), 0)
            valid = row_ids < n_total                             # (T, 1) bool
            logits = jnp.where(valid, logits, 0.0)

        # Numerically stable pieces; row_max cancels in (lse - tgt_logit).
        row_max = jnp.max(logits, axis=-1, keepdims=True)         # (T, 1)
        shifted = logits - row_max                                # (T, C)
        lse_sh = jnp.log(jnp.sum(jnp.exp(shifted), axis=-1, keepdims=True))  # (T, 1)

        col_ids = jax.lax.broadcasted_iota(jnp.int32, (t, c), 1)
        tgt_sh = jnp.sum(jnp.where(col_ids == tgt, shifted, 0.0),
                         axis=-1, keepdims=True)                  # (T, 1)

        per_row = lse_sh - tgt_sh                                 # (T, 1) = -log p[target]
        if needs_mask:
            per_row = jnp.where(valid, per_row, 0.0)
        acc_ref[0] += jnp.sum(per_row)

        @pl.when(i == pl.num_programs(0) - 1)
        def _():
            loss_ref[0] = acc_ref[0] * inv_n                      # mean over true N

    return _ce_kernel


def _choose_tile_n(n: int, c: int, itemsize: int, max_tile_n: int = 1024) -> int:
    """Pick a batch tile: ~4 MiB per logits block (x2 double-buffer fits every
    generation's scoped VMEM), rounded to the packing-aware sublane multiple."""
    sublane = 8 * max(1, 4 // max(1, itemsize))   # f32 -> 8, bf16 -> 16, int8 -> 32
    budget = 4 * 1024 * 1024
    tile = budget // max(1, c * itemsize)
    tile = max(sublane, min(max_tile_n, (tile // sublane) * sublane))
    if n <= tile:
        return n                                   # single block == full dim: always legal
    return tile


def cross_entropy_loss(outputs: jax.Array, targets: jax.Array, *,
                       max_tile_n: int = 1024) -> jax.Array:
    """outputs: (N, C) float logits (any float dtype), targets: (N,) int class ids.
    Returns scalar f32 mean cross-entropy."""
    n, c = outputs.shape
    targets2d = targets.astype(jnp.int32).reshape(n, 1)

    tile_n = _choose_tile_n(n, c, outputs.dtype.itemsize, max_tile_n)
    grid = (pl.cdiv(n, tile_n),)
    needs_mask = (n % tile_n) != 0

    loss = pl.pallas_call(
        _make_ce_kernel(n, needs_mask),
        out_shape=jax.ShapeDtypeStruct((1,), jnp.float32),
        grid=grid,
        in_specs=[
            pl.BlockSpec((tile_n, c), lambda i: (i, 0)),   # logits, native dtype
            pl.BlockSpec((tile_n, 1), lambda i: (i, 0)),   # targets
        ],
        out_specs=pl.BlockSpec(memory_space=pltpu.MemorySpace.SMEM),  # scalar via SMEM
        scratch_shapes=[pltpu.SMEM((1,), jnp.float32)],               # running sum
        compiler_params=pltpu.CompilerParams(
            # N axis carries the accumulator across steps -> must be "arbitrary".
            dimension_semantics=("arbitrary",),
            vmem_limit_bytes=32 * 1024 * 1024,
        ),
    )(outputs, targets2d)
    return loss[0]


if __name__ == "__main__":
    key = jax.random.PRNGKey(0)
    k_logits, k_targets, k2, k3 = jax.random.split(key, 4)

    def ref_ce(logits, tgt):
        logits = logits.astype(jnp.float32)
        return jnp.mean(
            jax.nn.logsumexp(logits, axis=-1)
            - jnp.take_along_axis(logits, tgt[:, None], axis=-1)[:, 0]
        )

    # Small shapes consistent with the module: batch=8, num_classes=32 (f32 path,
    # single block, mask elided).
    N, C = 8, 32
    outputs = jax.random.normal(k_logits, (N, C), dtype=jnp.float32)
    targets = jax.random.randint(k_targets, (N,), 0, C, dtype=jnp.int32)

    loss = cross_entropy_loss(outputs, targets)
    jax.block_until_ready(loss)
    assert jnp.allclose(loss, ref_ce(outputs, targets), atol=1e-5, rtol=1e-5), (
        loss, ref_ce(outputs, targets))

    # Exercise the gridded path: bf16 logits fed natively, multiple N tiles,
    # remainder rows masked (N=20 not a multiple of the tile).
    N2, C2 = 20, 32
    outputs2 = jax.random.normal(k2, (N2, C2), dtype=jnp.bfloat16)
    targets2 = jax.random.randint(k3, (N2,), 0, C2, dtype=jnp.int32)

    loss2 = cross_entropy_loss(outputs2, targets2, max_tile_n=8)
    jax.block_until_ready(loss2)
    assert jnp.allclose(loss2, ref_ce(outputs2, targets2), atol=1e-4, rtol=1e-4), (
        loss2, ref_ce(outputs2, targets2))

    print("KERNEL_OK")
</pallas_src>

<mosaic_0001>
module attributes {stable_mosaic.version = 11 : i64} {
  func.func @_ce_kernel(%arg0: i32, %arg1: memref<8x32xf32, #tpu.memory_space<vmem>>, %arg2: memref<8x1xi32, #tpu.memory_space<vmem>>, %arg3: memref<1xf32, #tpu.memory_space<smem>>, %arg4: memref<1xf32, #tpu.memory_space<smem>>) attributes {dimension_semantics = [#tpu.dimension_semantics<arbitrary>], iteration_bounds = array<i64: 1>, scalar_prefetch = 0 : i64, scratch_operands = 1 : i64, tpu.core_type = #tpu.core_type<tc>, window_params = [{transform_indices = @transform_0, window_bounds = array<i64: 8, 32>}, {transform_indices = @transform_1, window_bounds = array<i64: 8, 1>}, {transform_indices = @transform_2, window_bounds = array<i64: 1>}]} {
    %c0_i32 = arith.constant 0 : i32
    %0 = arith.cmpi eq, %arg0, %c0_i32 : i32
    %1 = arith.extui %0 : i1 to i32
    %c0_i32_0 = arith.constant 0 : i32
    %2 = arith.cmpi ne, %1, %c0_i32_0 : i32
    scf.if %2 {
      %cst_12 = arith.constant 0.000000e+00 : f32
      %c0_13 = arith.constant 0 : index
      %31 = memref.load %arg4[%c0_13] : memref<1xf32, #tpu.memory_space<smem>>
      memref.store %cst_12, %arg4[%c0_13] : memref<1xf32, #tpu.memory_space<smem>>
    } else {
    }
    %c0 = arith.constant 0 : index
    %c0_1 = arith.constant 0 : index
    %3 = vector.load %arg1[%c0, %c0_1] : memref<8x32xf32, #tpu.memory_space<vmem>>, vector<8x32xf32>
    %c0_2 = arith.constant 0 : index
    %c0_3 = arith.constant 0 : index
    %4 = vector.load %arg2[%c0_2, %c0_3] : memref<8x1xi32, #tpu.memory_space<vmem>>, vector<8x1xi32>
    %cst = arith.constant dense<0xFF800000> : vector<8xf32>
    %5 = vector.multi_reduction <maximumf>, %3, %cst [1] : vector<8x32xf32> to vector<8xf32>
    %6 = vector.shape_cast %5 : vector<8xf32> to vector<8x1xf32>
    %7 = vector.broadcast %6 : vector<8x1xf32> to vector<8x32xf32>
    %8 = arith.subf %3, %7 : vector<8x32xf32>
    %9 = math.exp %8 : vector<8x32xf32>
    %cst_4 = arith.constant dense<0.000000e+00> : vector<8xf32>
    %10 = vector.multi_reduction <add>, %9, %cst_4 [1] : vector<8x32xf32> to vector<8xf32>
    %11 = vector.shape_cast %10 : vector<8xf32> to vector<8x1xf32>
    %12 = math.log %11 : vector<8x1xf32>
    %13 = tpu.iota {dimensions = array<i32: 1>} : vector<8x32xi32>
    %14 = vector.broadcast %4 : vector<8x1xi32> to vector<8x32xi32>
    %15 = arith.cmpi eq, %13, %14 : vector<8x32xi32>
    %cst_5 = arith.constant 0.000000e+00 : f32
    %16 = vector.broadcast %cst_5 : f32 to vector<8x32xf32>
    %17 = arith.select %15, %8, %16 : vector<8x32xi1>, vector<8x32xf32>
    %cst_6 = arith.constant dense<0.000000e+00> : vector<8xf32>
    %18 = vector.multi_reduction <add>, %17, %cst_6 [1] : vector<8x32xf32> to vector<8xf32>
    %19 = vector.shape_cast %18 : vector<8xf32> to vector<8x1xf32>
    %20 = arith.subf %12, %19 : vector<8x1xf32>
    %c0_7 = arith.constant 0 : index
    %21 = memref.load %arg4[%c0_7] : memref<1xf32, #tpu.memory_space<smem>>
    %22 = vector.shape_cast %20 : vector<8x1xf32> to vector<1x8x1xf32>
    %cst_8 = arith.constant dense<0.000000e+00> : vector<1xf32>
    %23 = vector.multi_reduction <add>, %22, %cst_8 [1, 2] : vector<1x8x1xf32> to vector<1xf32>
    %24 = vector.shape_cast %23 : vector<1xf32> to vector<1x1x1xf32>
    %25 = vector.extract %24[0, 0, 0] : f32 from vector<1x1x1xf32>
    %26 = arith.addf %21, %25 : f32
    %c0_9 = arith.constant 0 : index
    %27 = memref.load %arg4[%c0_9] : memref<1xf32, #tpu.memory_space<smem>>
    memref.store %26, %arg4[%c0_9] : memref<1xf32, #tpu.memory_space<smem>>
    %c0_i32_10 = arith.constant 0 : i32
    %28 = arith.cmpi eq, %arg0, %c0_i32_10 : i32
    %29 = arith.extui %28 : i1 to i32
    %c0_i32_11 = arith.constant 0 : i32
    %30 = arith.cmpi ne, %29, %c0_i32_11 : i32
    scf.if %30 {
      %c0_12 = arith.constant 0 : index
      %31 = memref.load %arg4[%c0_12] : memref<1xf32, #tpu.memory_space<smem>>
      %cst_13 = arith.constant 1.250000e-01 : f32
      %32 = arith.mulf %31, %cst_13 : f32
      %c0_14 = arith.constant 0 : index
      %33 = memref.load %arg3[%c0_14] : memref<1xf32, #tpu.memory_space<smem>>
      memref.store %32, %arg3[%c0_14] : memref<1xf32, #tpu.memory_space<smem>>
    } else {
    }
    return
  }
  func.func @transform_0(%arg0: i32) -> (i32, i32) {
    %c0_i32 = arith.constant 0 : i32
    %c0_i32_0 = arith.constant 0 : i32
    return %arg0, %c0_i32 : i32, i32
  }
  func.func @transform_1(%arg0: i32) -> (i32, i32) {
    %c0_i32 = arith.constant 0 : i32
    %c0_i32_0 = arith.constant 0 : i32
    return %arg0, %c0_i32 : i32, i32
  }
  func.func @transform_2(%arg0: i32) -> i32 {
    %c0_i32 = arith.constant 0 : i32
    %c0_i32_0 = arith.constant 0 : i32
    return %c0_i32 : i32
  }
}

</mosaic_0001>

<llo_original>
// kernel: tpu_custom_call.1
$region0: #{tpu_custom_call.1}
  #allocation0 [shape = 'u32[]', space=smem, size = 0x4, offset = 0x4, fixed_abs, tag = 'smem constant byte address 0x4 - core index']
  #allocation1 [shape = 'u32[144,128]{1,0:T(1,128)}', space=vmem, size = 0x12000, scoped, tag = 'internal scratch']
  #allocation2 [shape = 'f32[1]{0:T(128)}', space=smem, size = 0x200, scoped, tag = 'scratch operand']
  %s0 = inlined_call_operand.vmem [shape: f32[8,32], index: 0, kind: input, shape index: {}]
  %s1 = inlined_call_operand.vmem [shape: s32[8,1], index: 1, kind: input, shape index: {}]
  %s2 = inlined_call_operand.hbm [shape: f32[1], index: 2, kind: output, shape index: {}]
  %s3 = sld [smem:[#allocation0]]
  $region26: #{tpu_custom_call.1} parent=0
    _
  %s5 = ssub.s32 1, %s3
  %s6 = scalar_select 0, %s5, %s3
  $region1: #{tpu_custom_call.1} parent=0
    #allocation3 [shape = 'u8[512]{0}', space=smem, size = 0x200, scoped, tag = 'output window, operand 0, single buffered']
    #allocation4 [shape = 's32[1]{0}', space=sflag, size = 0x4, scoped, tag = 'scoped memory for tpu_custom_call.1']
    %7 = vsyncpa [#allocation4], 0
    // Predicated region
    $region2: #{tpu_custom_call.1} parent=1 // pred_check
      _
    $region3: #{tpu_custom_call.1} parent=1 // pred_check_branch
      %9 = sbr.rel (0) target = $region5
    $region4: #{tpu_custom_call.1} parent=1 // pred_region
      _
    $region5: #{tpu_custom_call.1} parent=1 // pred_fallthru
      _
    // Predicated region
    $region6: #{tpu_custom_call.1} parent=1 // pred_check
      _
    $region7: #{tpu_custom_call.1} parent=1 // pred_check_branch
      %11 = sbr.rel (0) target = $region9
    $region8: #{tpu_custom_call.1} parent=1 // pred_region
      _
    $region9: #{tpu_custom_call.1} parent=1 // pred_fallthru
      _
    %p12 = scmp.eq.s32.totalorder 0, 0
    // Predicated region
    $region10: #{tpu_custom_call.1} parent=1 // pred_check
      %p13 = pneg %p12
    $region11: #{tpu_custom_call.1} parent=1 // pred_check_branch
      %15 = sbr.rel (%p13) target = $region13
    $region12: #{tpu_custom_call.1} parent=1 // pred_region
      %s16 = scalar_lea.smem [#allocation2], 0
      %17 = sst [smem:[%s16]] 0.0
    $region13: #{tpu_custom_call.1} parent=1 // pred_fallthru
      _
    %v18 = vld [vmem:[%s0] sm:$0xff]
    %v19 = vld [vmem:[%s1] sm:$0xff]
    %vm20 = vcmask 261120
    %v21 = vsel %vm20, %v18, -inf
    %22 = vmax.xlane.f32.xlu0 %v21
    %v23 = vpop.xlane.xlu0 %22
    %v24 = vsub.f32 %v18, %v23
    %v25 = vmul.f32 %v24, 1.442695
    %v26 = vpow.pop %v25
    %v27 = vsel %vm20, %v26, 0.0
    %28 = vadd.xlane.f32.xlu0 %v27
    %v29 = vpop.xlane.xlu0 %28
    %v30 = vlog2.pop %v29
    %v31 = vmul.f32 %v30, 0.6931472
    %v32 = vlaneseq
    %v33 = vand.u32 %v32, 127
    %34 = vset.pattern.permute.xlu0 0
    %35 = vperm.xlu0 %34, %v19
    %v36 = vpop.permute.xlu0 %35
    %vm37 = vcmp.eq.s32.totalorder %v33, %v36
    %v38 = vsel %vm37, %v24, 0.0
    %v39 = vsel %vm20, %v38, 0.0
    %40 = vadd.xlane.f32.xlu0 %v39
    %v41 = vpop.xlane.xlu0 %40
    %v42 = vsub.f32 %v31, %v41
    %s43 = sld [smem:[#allocation2]]
    %vm44 = vcmask 7168
    %v45 = vsel %vm44, %v42, 0.0
    %46 = vadd.xlane.f32.xlu0 %v45
    %v47 = vpop.xlane.xlu0 %46
    %v48 = vrot.slane %v47, 4
    %v49 = vadd.f32 %v47, %v48
    %v50 = vrot.slane %v49, 2
    %v51 = vadd.f32 %v49, %v50
    %v52 = vrot.slane %v51, 1
    %v53 = vadd.f32 %v51, %v52
    %s54 = vtos %v53
    %s55 = sadd.f32 %s43, %s54
    %s56 = scalar_lea.smem [#allocation2], 0
    %57 = sst [smem:[%s56]] %s55
    // Predicated region
    $region14: #{tpu_custom_call.1} parent=1 // pred_check
      %p58 = pneg %p12
    $region15: #{tpu_custom_call.1} parent=1 // pred_check_branch
      %60 = sbr.rel (%p58) target = $region17
    $region16: #{tpu_custom_call.1} parent=1 // pred_region
      %s61 = sld [smem:[#allocation2]]
      %s62 = smul.f32 %s61, 0.125
      %s63 = scalar_lea.smem [#allocation3], 0
      %64 = sst [smem:[%s63]] %s62
    $region17: #{tpu_custom_call.1} parent=1 // pred_fallthru
      _
    // Predicated region
    $region18: #{tpu_custom_call.1} parent=1 // pred_check
      _
    $region19: #{tpu_custom_call.1} parent=1 // pred_check_branch
      %66 = sbr.rel (0) target = $region21
    $region20: #{tpu_custom_call.1} parent=1 // pred_region
      %s68 = ssub.s32 16, 16
      %69 = vsyncadd [#allocation4], %s68
      %72 = dma.smem_to_hbm [#allocation3], 16, %s2, [#allocation4]
    $region21: #{tpu_custom_call.1} parent=1 // pred_fallthru
      _
    // Predicated region
    $region22: #{tpu_custom_call.1} parent=1 // pred_check
      _
    $region23: #{tpu_custom_call.1} parent=1 // pred_check_branch
      %74 = sbr.rel (0) target = $region25
    $region24: #{tpu_custom_call.1} parent=1 // pred_region
      %75 = dma.done [#allocation4], 16
    $region25: #{tpu_custom_call.1} parent=1 // pred_fallthru
      _
    %76 = sfence
    %77 = vsyncpa [#allocation4], 1

</llo_original>
